<compile_context>
chip_gen: v7x
topology: tpu7x:2x2x1
jax: 0.10.0
libtpu: 0.0.40
codegen_flags: <defaults>
</compile_context>

<pallas_src>
import jax
import jax.numpy as jnp
from jax.experimental import pallas as pl
from jax.experimental import pallas as _pl_unused  # keep namespace minimal
from jax.experimental.pallas import tpu as pltpu  # noqa: F401 (TPU backend)

FEATURES = 26
HIDDEN = 64          # lin1 takes 64 inputs -> hidden_channels must be 64
LANE = 128           # TPU lane width; all feature dims zero-padded to this
FEAT_PAD = LANE      # padded input-feature width
HID_PAD = LANE       # padded hidden width
NODES_PAD = LANE     # padded node count (lane-dense adjacency / pooling)
GRAPHS_PAD = 8       # padded #graphs (full sublane) for an unmasked out store


# ----------------------------- Pallas kernel ------------------------------- #

def graphsage_fused_kernel(a_ref, x_ref, w1_ref, b1_ref, w2_ref, b2_ref,
                           p_ref, wl_ref, bl_ref, o_ref):
    """Whole GraphSAGE forward in one kernel; intermediates stay on-chip.

    a_ref : (NODES_PAD, NODES_PAD)  bf16  row-normalized adjacency (mean aggr)
    x_ref : (NODES_PAD, FEAT_PAD)   bf16  node features, zero-padded
    w*_ref: (2*128, 128)            bf16  [W_l; W_r] stacked -> one matmul/conv
    b*_ref: (1, 128)                f32   lin_l bias (lin_r has no bias)
    p_ref : (GRAPHS_PAD, NODES_PAD) bf16  mean-pool matrix (rows = 1/count)
    wl_ref: (128, 128)              bf16  lin1 weight, zero-padded
    bl_ref: (1, 128)                f32   lin1 bias, zero-padded
    o_ref : (GRAPHS_PAD, 128)       f32   lane-dense output; caller slices
                                          [:num_graphs, :FEATURES]
    """
    a = a_ref[...]
    x = x_ref[...]

    # ---- SAGEConv1 + ReLU:  concat([A @ x, x], -1) @ [Wl1; Wr1] + b1 ----
    neigh1 = jnp.dot(a, x, preferred_element_type=jnp.float32)
    z1 = jnp.concatenate([neigh1.astype(jnp.bfloat16), x], axis=-1)     # (N,256)
    h1 = jnp.dot(z1, w1_ref[...], preferred_element_type=jnp.float32) + b1_ref[...]
    h1 = jnp.maximum(h1, 0.0).astype(jnp.bfloat16)                      # (N,128)

    # ---- SAGEConv2 ----
    neigh2 = jnp.dot(a, h1, preferred_element_type=jnp.float32)
    z2 = jnp.concatenate([neigh2.astype(jnp.bfloat16), h1], axis=-1)    # (N,256)
    h2 = jnp.dot(z2, w2_ref[...], preferred_element_type=jnp.float32) + b2_ref[...]
    h2 = h2.astype(jnp.bfloat16)                                        # (N,128)

    # ---- global_mean_pool + (dropout = identity at inference) + lin1 ----
    pooled = jnp.dot(p_ref[...], h2, preferred_element_type=jnp.float32)
    out = (jnp.dot(pooled.astype(jnp.bfloat16), wl_ref[...],
                   preferred_element_type=jnp.float32) + bl_ref[...])
    o_ref[...] = out.astype(o_ref.dtype)                                # (8,128)


# ----------------------------- wrappers ------------------------------------ #

def _full_spec(shape):
    return pl.BlockSpec(shape, lambda: (0,) * len(shape))


def graphsage_pallas(a, x, w1, b1, w2, b2, p, wl, bl):
    n = a.shape[0]
    flops = (2 * n * n * FEAT_PAD                     # A @ x
             + 2 * n * (2 * FEAT_PAD) * HID_PAD       # z1 @ W_cat1
             + 2 * n * n * HID_PAD                    # A @ h1
             + 2 * n * (2 * HID_PAD) * HID_PAD        # z2 @ W_cat2
             + 2 * GRAPHS_PAD * n * HID_PAD           # P @ h2
             + 2 * GRAPHS_PAD * HID_PAD * LANE)       # pooled @ W_lin
    operands = (a, x, w1, b1, w2, b2, p, wl, bl)
    bytes_accessed = (sum(v.size * v.dtype.itemsize for v in operands)
                      + GRAPHS_PAD * LANE * 4)
    return pl.pallas_call(
        graphsage_fused_kernel,
        out_shape=jax.ShapeDtypeStruct((GRAPHS_PAD, LANE), jnp.float32),
        in_specs=[_full_spec(v.shape) for v in operands],
        out_specs=_full_spec((GRAPHS_PAD, LANE)),
        cost_estimate=pl.CostEstimate(
            flops=flops, transcendentals=0, bytes_accessed=bytes_accessed),
    )(*operands)


def _pad2(m, rows, cols):
    r, c = m.shape
    return jnp.pad(m, ((0, rows - r), (0, cols - c)))


def prepare_operands(x, A, P, params):
    """Zero-pad to lane-dense shapes, stack [W_l; W_r], cast operands to bf16."""
    a = _pad2(A, NODES_PAD, NODES_PAD).astype(jnp.bfloat16)
    xp = _pad2(x, NODES_PAD, FEAT_PAD).astype(jnp.bfloat16)
    w1 = jnp.concatenate(
        [_pad2(params["wl1"], FEAT_PAD, HID_PAD),
         _pad2(params["wr1"], FEAT_PAD, HID_PAD)], axis=0).astype(jnp.bfloat16)
    b1 = _pad2(params["bl1"], 1, HID_PAD)                       # keep f32
    w2 = jnp.concatenate(
        [_pad2(params["wl2"], HID_PAD, HID_PAD),
         _pad2(params["wr2"], HID_PAD, HID_PAD)], axis=0).astype(jnp.bfloat16)
    b2 = _pad2(params["bl2"], 1, HID_PAD)                       # keep f32
    pp = _pad2(P, GRAPHS_PAD, NODES_PAD).astype(jnp.bfloat16)
    wl = _pad2(params["w_lin1"], HID_PAD, LANE).astype(jnp.bfloat16)
    bl = _pad2(params["b_lin1"], 1, LANE)                       # keep f32
    return a, xp, w1, b1, w2, b2, pp, wl, bl


def build_mean_adjacency(edge_index, num_nodes):
    """Row-normalized adjacency: A[i, j] = (# edges j->i) / in_degree(i)."""
    src, dst = edge_index[0], edge_index[1]
    A = jnp.zeros((num_nodes, num_nodes), jnp.float32).at[dst, src].add(1.0)
    deg = A.sum(axis=1, keepdims=True)
    return A / jnp.maximum(deg, 1.0)


def build_mean_pool_matrix(batch_vec, num_graphs, num_nodes):
    onehot = (jnp.arange(num_graphs)[:, None] == batch_vec[None, :]).astype(jnp.float32)
    counts = onehot.sum(axis=1, keepdims=True)
    return onehot / jnp.maximum(counts, 1.0)


@jax.jit
def graphsage_forward(x, A, P, params):
    num_graphs = P.shape[0]
    out_pad = graphsage_pallas(*prepare_operands(x, A, P, params))
    return out_pad[:num_graphs, :FEATURES]


def graphsage_reference(x, A, P, params):
    """Pure-JAX fp32 reference with identical module semantics."""
    h = (A @ x) @ params["wl1"] + x @ params["wr1"] + params["bl1"]
    h = jnp.maximum(h, 0.0)
    h = (A @ h) @ params["wl2"] + h @ params["wr2"] + params["bl2"]
    pooled = P @ h
    return pooled @ params["w_lin1"] + params["b_lin1"]


# ----------------------------- main ----------------------------------------- #

def init_params(key):
    ks = jax.random.split(key, 7)
    s = 0.1
    return {
        # SAGEConv1: 26 -> 64   (lin_l has bias, lin_r has no bias)
        "wl1": s * jax.random.normal(ks[0], (FEATURES, HIDDEN), jnp.float32),
        "bl1": s * jax.random.normal(ks[1], (1, HIDDEN), jnp.float32),
        "wr1": s * jax.random.normal(ks[2], (FEATURES, HIDDEN), jnp.float32),
        # SAGEConv2: 64 -> 64
        "wl2": s * jax.random.normal(ks[3], (HIDDEN, HIDDEN), jnp.float32),
        "bl2": s * jax.random.normal(ks[4], (1, HIDDEN), jnp.float32),
        "wr2": s * jax.random.normal(ks[5], (HIDDEN, HIDDEN), jnp.float32),
        # lin1: 64 -> 26
        "w_lin1": s * jax.random.normal(ks[6], (HIDDEN, FEATURES), jnp.float32),
        "b_lin1": jnp.zeros((1, FEATURES), jnp.float32),
    }


if __name__ == "__main__":
    key = jax.random.PRNGKey(0)
    k_x, k_e, k_p = jax.random.split(key, 3)

    num_nodes = 32
    num_edges = 64
    num_graphs = 2

    x = jax.random.normal(k_x, (num_nodes, FEATURES), jnp.float32)
    edge_index = jax.random.randint(k_e, (2, num_edges), 0, num_nodes, jnp.int32)
    batch_vec = jnp.concatenate(
        [jnp.zeros(num_nodes // 2, jnp.int32), jnp.ones(num_nodes // 2, jnp.int32)]
    )

    A = build_mean_adjacency(edge_index, num_nodes)
    P = build_mean_pool_matrix(batch_vec, num_graphs, num_nodes)
    params = init_params(k_p)

    out = graphsage_forward(x, A, P, params)
    out = jax.block_until_ready(out)

    assert out.shape == (num_graphs, FEATURES), out.shape
    assert bool(jnp.all(jnp.isfinite(out)))

    # correctness vs fp32 reference (bf16 operands -> loose tolerance)
    ref = graphsage_reference(x, A, P, params)
    assert bool(jnp.allclose(out, ref, rtol=5e-2, atol=5e-2)), (
        float(jnp.max(jnp.abs(out - ref))))

    print("KERNEL_OK")
</pallas_src>

<mosaic_0001>
module attributes {stable_mosaic.version = 11 : i64} {
  func.func @graphsage_fused_kernel(%arg0: memref<128x128xbf16, #tpu.memory_space<vmem>>, %arg1: memref<128x128xbf16, #tpu.memory_space<vmem>>, %arg2: memref<256x128xbf16, #tpu.memory_space<vmem>>, %arg3: memref<1x128xf32, #tpu.memory_space<vmem>>, %arg4: memref<256x128xbf16, #tpu.memory_space<vmem>>, %arg5: memref<1x128xf32, #tpu.memory_space<vmem>>, %arg6: memref<8x128xbf16, #tpu.memory_space<vmem>>, %arg7: memref<128x128xbf16, #tpu.memory_space<vmem>>, %arg8: memref<1x128xf32, #tpu.memory_space<vmem>>, %arg9: memref<8x128xf32, #tpu.memory_space<vmem>>) attributes {dimension_semantics = [], scalar_prefetch = 0 : i64, scratch_operands = 0 : i64, tpu.core_type = #tpu.core_type<tc>} {
    %c0 = arith.constant 0 : index
    %c0_0 = arith.constant 0 : index
    %0 = vector.load %arg0[%c0, %c0_0] : memref<128x128xbf16, #tpu.memory_space<vmem>>, vector<128x128xbf16>
    %c0_1 = arith.constant 0 : index
    %c0_2 = arith.constant 0 : index
    %1 = vector.load %arg1[%c0_1, %c0_2] : memref<128x128xbf16, #tpu.memory_space<vmem>>, vector<128x128xbf16>
    %cst = arith.constant dense<0.000000e+00> : vector<128x128xf32>
    %2 = tpu.matmul %0, %1, %cst {dimension_numbers = #tpu.dot_dimension_numbers<[1], [0], [0], [1], [0, 0, 1, 1], [], []>} : vector<128x128xbf16>, vector<128x128xbf16>, vector<128x128xf32> -> vector<128x128xf32>
    %3 = arith.truncf %2 : vector<128x128xf32> to vector<128x128xbf16>
    %4 = tpu.concatenate %3, %1 in 1 : vector<128x128xbf16>, vector<128x128xbf16> -> vector<128x256xbf16>
    %c0_3 = arith.constant 0 : index
    %c0_4 = arith.constant 0 : index
    %5 = vector.load %arg2[%c0_3, %c0_4] : memref<256x128xbf16, #tpu.memory_space<vmem>>, vector<256x128xbf16>
    %cst_5 = arith.constant dense<0.000000e+00> : vector<128x128xf32>
    %6 = tpu.matmul %4, %5, %cst_5 {dimension_numbers = #tpu.dot_dimension_numbers<[1], [0], [0], [1], [0, 0, 1, 1], [], []>} : vector<128x256xbf16>, vector<256x128xbf16>, vector<128x128xf32> -> vector<128x128xf32>
    %c0_6 = arith.constant 0 : index
    %c0_7 = arith.constant 0 : index
    %7 = vector.load %arg3[%c0_6, %c0_7] : memref<1x128xf32, #tpu.memory_space<vmem>>, vector<1x128xf32>
    %8 = vector.broadcast %7 : vector<1x128xf32> to vector<128x128xf32>
    %9 = arith.addf %6, %8 : vector<128x128xf32>
    %cst_8 = arith.constant 0.000000e+00 : f32
    %10 = vector.broadcast %cst_8 : f32 to vector<128x128xf32>
    %11 = arith.maximumf %9, %10 : vector<128x128xf32>
    %12 = arith.truncf %11 : vector<128x128xf32> to vector<128x128xbf16>
    %cst_9 = arith.constant dense<0.000000e+00> : vector<128x128xf32>
    %13 = tpu.matmul %0, %12, %cst_9 {dimension_numbers = #tpu.dot_dimension_numbers<[1], [0], [0], [1], [0, 0, 1, 1], [], []>} : vector<128x128xbf16>, vector<128x128xbf16>, vector<128x128xf32> -> vector<128x128xf32>
    %14 = arith.truncf %13 : vector<128x128xf32> to vector<128x128xbf16>
    %15 = tpu.concatenate %14, %12 in 1 : vector<128x128xbf16>, vector<128x128xbf16> -> vector<128x256xbf16>
    %c0_10 = arith.constant 0 : index
    %c0_11 = arith.constant 0 : index
    %16 = vector.load %arg4[%c0_10, %c0_11] : memref<256x128xbf16, #tpu.memory_space<vmem>>, vector<256x128xbf16>
    %cst_12 = arith.constant dense<0.000000e+00> : vector<128x128xf32>
    %17 = tpu.matmul %15, %16, %cst_12 {dimension_numbers = #tpu.dot_dimension_numbers<[1], [0], [0], [1], [0, 0, 1, 1], [], []>} : vector<128x256xbf16>, vector<256x128xbf16>, vector<128x128xf32> -> vector<128x128xf32>
    %c0_13 = arith.constant 0 : index
    %c0_14 = arith.constant 0 : index
    %18 = vector.load %arg5[%c0_13, %c0_14] : memref<1x128xf32, #tpu.memory_space<vmem>>, vector<1x128xf32>
    %19 = vector.broadcast %18 : vector<1x128xf32> to vector<128x128xf32>
    %20 = arith.addf %17, %19 : vector<128x128xf32>
    %21 = arith.truncf %20 : vector<128x128xf32> to vector<128x128xbf16>
    %c0_15 = arith.constant 0 : index
    %c0_16 = arith.constant 0 : index
    %22 = vector.load %arg6[%c0_15, %c0_16] : memref<8x128xbf16, #tpu.memory_space<vmem>>, vector<8x128xbf16>
    %cst_17 = arith.constant dense<0.000000e+00> : vector<8x128xf32>
    %23 = tpu.matmul %22, %21, %cst_17 {dimension_numbers = #tpu.dot_dimension_numbers<[1], [0], [0], [1], [0, 0, 1, 1], [], []>} : vector<8x128xbf16>, vector<128x128xbf16>, vector<8x128xf32> -> vector<8x128xf32>
    %24 = arith.truncf %23 : vector<8x128xf32> to vector<8x128xbf16>
    %c0_18 = arith.constant 0 : index
    %c0_19 = arith.constant 0 : index
    %25 = vector.load %arg7[%c0_18, %c0_19] : memref<128x128xbf16, #tpu.memory_space<vmem>>, vector<128x128xbf16>
    %cst_20 = arith.constant dense<0.000000e+00> : vector<8x128xf32>
    %26 = tpu.matmul %24, %25, %cst_20 {dimension_numbers = #tpu.dot_dimension_numbers<[1], [0], [0], [1], [0, 0, 1, 1], [], []>} : vector<8x128xbf16>, vector<128x128xbf16>, vector<8x128xf32> -> vector<8x128xf32>
    %c0_21 = arith.constant 0 : index
    %c0_22 = arith.constant 0 : index
    %27 = vector.load %arg8[%c0_21, %c0_22] : memref<1x128xf32, #tpu.memory_space<vmem>>, vector<1x128xf32>
    %28 = vector.broadcast %27 : vector<1x128xf32> to vector<8x128xf32>
    %29 = arith.addf %26, %28 : vector<8x128xf32>
    %c0_23 = arith.constant 0 : index
    %c0_24 = arith.constant 0 : index
    %30 = vector.load %arg9[%c0_23, %c0_24] : memref<8x128xf32, #tpu.memory_space<vmem>>, vector<8x128xf32>
    tpu.vector_store %arg9[%c0_23, %c0_24], %29 {strides = array<i32>} : memref<8x128xf32, #tpu.memory_space<vmem>>, vector<8x128xf32>,
    return
  }
}

</mosaic_0001>

<llo_original>
// kernel: graphsage_forward.1
$region0: #{graphsage_forward.1}
  #allocation0 [shape = 'u32[]', space=smem, size = 0x4, offset = 0x4, fixed_abs, tag = 'smem constant byte address 0x4 - core index']
  #allocation1 [shape = 'u32[144,128]{1,0:T(1,128)}', space=vmem, size = 0x12000, scoped, tag = 'internal scratch']
  %s0 = inlined_call_operand.vmem [shape: bf16[128,128], index: 0, kind: input, shape index: {}]
  %s1 = inlined_call_operand.vmem [shape: bf16[128,128], index: 1, kind: input, shape index: {}]
  %s2 = inlined_call_operand.vmem [shape: bf16[256,128], index: 2, kind: input, shape index: {}]
  %s3 = inlined_call_operand.vmem [shape: f32[1,128], index: 3, kind: input, shape index: {}]
  %s4 = inlined_call_operand.vmem [shape: bf16[256,128], index: 4, kind: input, shape index: {}]
  %s5 = inlined_call_operand.vmem [shape: f32[1,128], index: 5, kind: input, shape index: {}]
  %s6 = inlined_call_operand.vmem [shape: bf16[8,128], index: 6, kind: input, shape index: {}]
  %s7 = inlined_call_operand.vmem [shape: bf16[128,128], index: 7, kind: input, shape index: {}]
  %s8 = inlined_call_operand.vmem [shape: f32[1,128], index: 8, kind: input, shape index: {}]
  %s9 = inlined_call_operand.vmem [shape: f32[8,128], index: 9, kind: output, shape index: {}]
  %s10 = sld [smem:[#allocation0]]
  $region46: #{graphsage_forward.1} parent=0
    _
  %s12 = ssub.s32 1, %s10
  %s13 = scalar_select 0, %s12, %s10
  // Predicated region
  $region2: #{graphsage_forward.1} parent=0 // pred_check
    _
  $region3: #{graphsage_forward.1} parent=0 // pred_check_branch
    %15 = sbr.rel (0) target = $region5
  $region4: #{graphsage_forward.1} parent=0 // pred_region
    _
  $region5: #{graphsage_forward.1} parent=0 // pred_fallthru
    _
  // Predicated region
  $region6: #{graphsage_forward.1} parent=0 // pred_check
    _
  $region7: #{graphsage_forward.1} parent=0 // pred_check_branch
    %17 = sbr.rel (0) target = $region9
  $region8: #{graphsage_forward.1} parent=0 // pred_region
    _
  $region9: #{graphsage_forward.1} parent=0 // pred_fallthru
    _
  // Predicated region
  $region10: #{graphsage_forward.1} parent=0 // pred_check
    _
  $region11: #{graphsage_forward.1} parent=0 // pred_check_branch
    %19 = sbr.rel (0) target = $region13
  $region12: #{graphsage_forward.1} parent=0 // pred_region
    _
  $region13: #{graphsage_forward.1} parent=0 // pred_fallthru
    _
  // Predicated region
  $region14: #{graphsage_forward.1} parent=0 // pred_check
    _
  $region15: #{graphsage_forward.1} parent=0 // pred_check_branch
    %21 = sbr.rel (0) target = $region17
  $region16: #{graphsage_forward.1} parent=0 // pred_region
    _
  $region17: #{graphsage_forward.1} parent=0 // pred_fallthru
    _
  // Predicated region
  $region18: #{graphsage_forward.1} parent=0 // pred_check
    _
  $region19: #{graphsage_forward.1} parent=0 // pred_check_branch
    %23 = sbr.rel (0) target = $region21
  $region20: #{graphsage_forward.1} parent=0 // pred_region
    _
  $region21: #{graphsage_forward.1} parent=0 // pred_fallthru
    _
  // Predicated region
  $region22: #{graphsage_forward.1} parent=0 // pred_check
    _
  $region23: #{graphsage_forward.1} parent=0 // pred_check_branch
    %25 = sbr.rel (0) target = $region25
  $region24: #{graphsage_forward.1} parent=0 // pred_region
    _
  $region25: #{graphsage_forward.1} parent=0 // pred_fallthru
    _
  // Predicated region
  $region26: #{graphsage_forward.1} parent=0 // pred_check
    _
  $region27: #{graphsage_forward.1} parent=0 // pred_check_branch
    %27 = sbr.rel (0) target = $region29
  $region28: #{graphsage_forward.1} parent=0 // pred_region
    _
  $region29: #{graphsage_forward.1} parent=0 // pred_fallthru
    _
  // Predicated region
  $region30: #{graphsage_forward.1} parent=0 // pred_check
    _
  $region31: #{graphsage_forward.1} parent=0 // pred_check_branch
    %29 = sbr.rel (0) target = $region33
  $region32: #{graphsage_forward.1} parent=0 // pred_region
    _
  $region33: #{graphsage_forward.1} parent=0 // pred_fallthru
    _
  // Predicated region
  $region34: #{graphsage_forward.1} parent=0 // pred_check
    _
  $region35: #{graphsage_forward.1} parent=0 // pred_check_branch
    %31 = sbr.rel (0) target = $region37
  $region36: #{graphsage_forward.1} parent=0 // pred_region
    _
  $region37: #{graphsage_forward.1} parent=0 // pred_fallthru
    _
  %v33 = vld [vmem:[%s0] sm:$0xf]
  %v34 = vld [vmem:[%s0 + $0x4] sm:$0xf]
  %v35 = vld [vmem:[%s0 + $0x8] sm:$0xf]
  %v36 = vld [vmem:[%s0 + $0xc] sm:$0xf]
  %v37 = vld [vmem:[%s0 + $0x10] sm:$0xf]
  %v38 = vld [vmem:[%s0 + $0x14] sm:$0xf]
  %v39 = vld [vmem:[%s0 + $0x18] sm:$0xf]
  %v40 = vld [vmem:[%s0 + $0x1c] sm:$0xf]
  %v41 = vld [vmem:[%s0 + $0x20] sm:$0xf]
  %v42 = vld [vmem:[%s0 + $0x24] sm:$0xf]
  %v43 = vld [vmem:[%s0 + $0x28] sm:$0xf]
  %v44 = vld [vmem:[%s0 + $0x2c] sm:$0xf]
  %v45 = vld [vmem:[%s0 + $0x30] sm:$0xf]
  %v46 = vld [vmem:[%s0 + $0x34] sm:$0xf]
  %v47 = vld [vmem:[%s0 + $0x38] sm:$0xf]
  %v48 = vld [vmem:[%s0 + $0x3c] sm:$0xf]
  %v49 = vld [vmem:[%s1] sm:$0xf]
  %v50 = vld [vmem:[%s1 + $0x4] sm:$0xf]
  %v51 = vld [vmem:[%s1 + $0x8] sm:$0xf]
  %v52 = vld [vmem:[%s1 + $0xc] sm:$0xf]
  %v53 = vld [vmem:[%s1 + $0x10] sm:$0xf]
  %v54 = vld [vmem:[%s1 + $0x14] sm:$0xf]
  %v55 = vld [vmem:[%s1 + $0x18] sm:$0xf]
  %v56 = vld [vmem:[%s1 + $0x1c] sm:$0xf]
  %v57 = vld [vmem:[%s1 + $0x20] sm:$0xf]
  %v58 = vld [vmem:[%s1 + $0x24] sm:$0xf]
  %v59 = vld [vmem:[%s1 + $0x28] sm:$0xf]
  %v60 = vld [vmem:[%s1 + $0x2c] sm:$0xf]
  %v61 = vld [vmem:[%s1 + $0x30] sm:$0xf]
  %v62 = vld [vmem:[%s1 + $0x34] sm:$0xf]
  %v63 = vld [vmem:[%s1 + $0x38] sm:$0xf]
  %v64 = vld [vmem:[%s1 + $0x3c] sm:$0xf]
  %v81 = vunpack.c.l.b16 %v33
  %v82 = vunpack.c.l.b16 %v34
  %v83 = vunpack.c.l.b16 %v35
  %v84 = vunpack.c.l.b16 %v36
  %v85 = vunpack.c.l.b16 %v37
  %v86 = vunpack.c.l.b16 %v38
  %v87 = vunpack.c.l.b16 %v39
  %v88 = vunpack.c.l.b16 %v40
  %v89 = vunpack.c.l.b16 %v41
  %v90 = vunpack.c.l.b16 %v42
  %v91 = vunpack.c.l.b16 %v43
  %v92 = vunpack.c.l.b16 %v44
  %v93 = vunpack.c.l.b16 %v45
  %v94 = vunpack.c.l.b16 %v46
  %v95 = vunpack.c.l.b16 %v47
  %v96 = vunpack.c.l.b16 %v48
  %v97 = vpack.c.b16 %v82, %v81
  %v98 = vpack.c.b16 %v84, %v83
  %v99 = vpack.c.b16 %v86, %v85
  %v100 = vpack.c.b16 %v88, %v87
  %v101 = vpack.c.b16 %v90, %v89
  %v102 = vpack.c.b16 %v92, %v91
  %v103 = vpack.c.b16 %v94, %v93
  %v104 = vpack.c.b16 %v96, %v95
  %v129 = vunpack.c.l.b16 %v49
  %v130 = vunpack.c.l.b16 %v50
  %v131 = vunpack.c.l.b16 %v51
  %v132 = vunpack.c.l.b16 %v52
  %v133 = vunpack.c.l.b16 %v53
  %v134 = vunpack.c.l.b16 %v54
  %v135 = vunpack.c.l.b16 %v55
  %v136 = vunpack.c.l.b16 %v56
  %v137 = vunpack.c.l.b16 %v57
  %v138 = vunpack.c.l.b16 %v58
  %v139 = vunpack.c.l.b16 %v59
  %v140 = vunpack.c.l.b16 %v60
  %v141 = vunpack.c.l.b16 %v61
  %v142 = vunpack.c.l.b16 %v62
  %v143 = vunpack.c.l.b16 %v63
  %v144 = vunpack.c.l.b16 %v64
  %v145 = vpack.c.b16 %v130, %v129
  %v146 = vpack.c.b16 %v132, %v131
  %v147 = vpack.c.b16 %v134, %v133
  %v148 = vpack.c.b16 %v136, %v135
  %v149 = vpack.c.b16 %v138, %v137
  %v150 = vpack.c.b16 %v140, %v139
  %v151 = vpack.c.b16 %v142, %v141
  %v152 = vpack.c.b16 %v144, %v143
  %161 = vmatprep.subr.bf16.mxu0 0
  %162 = vmatpush1.bf16.msra.mxu0 %v145
  %163 = vmatprep.subr.bf16.mxu0 0
  %164 = vmatpush1.bf16.msra.mxu0 %v146
  %165 = vmatprep.subr.bf16.mxu0 0
  %166 = vmatpush1.bf16.msra.mxu0 %v147
  %167 = vmatprep.subr.bf16.mxu0 0
  %168 = vmatpush1.bf16.msra.mxu0 %v148
  %169 = vmatprep.subr.bf16.mxu0 0
  %170 = vmatpush1.bf16.msra.mxu0 %v149
  %171 = vmatprep.subr.bf16.mxu0 0
  %172 = vmatpush1.bf16.msra.mxu0 %v150
  %173 = vmatprep.subr.bf16.mxu0 0
  %174 = vmatpush1.bf16.msra.mxu0 %v151
  %175 = vmatprep.subr.bf16.mxu0 0
  %176 = vmatpush1.bf16.msra.mxu0 %v152
  %177 = vmatprep.subr.bf16.mxu0 0
  %178 = vmatpush1.bf16.msra.mxu0 0
  %179 = vmatprep.subr.bf16.mxu0 0
  %180 = vmatpush1.bf16.msra.mxu0 0
  %181 = vmatprep.subr.bf16.mxu0 0
  %182 = vmatpush1.bf16.msra.mxu0 0
  %183 = vmatprep.subr.bf16.mxu0 0
  %184 = vmatpush1.bf16.msra.mxu0 0
  %185 = vmatprep.subr.bf16.mxu0 0
  %186 = vmatpush1.bf16.msra.mxu0 0
  %187 = vmatprep.subr.bf16.mxu0 0
  %188 = vmatpush1.bf16.msra.mxu0 0
  %189 = vmatprep.subr.bf16.mxu0 0
  %190 = vmatpush1.bf16.msra.mxu0 0
  %191 = vmatprep.subr.bf16.mxu0 0
  %192 = vmatpush1.bf16.msra.mxu0 0
  %193 = vmatprep.mubr.bf16.mxu0 0
  %194 = vmatmul.mubr.bf16.gmra.mrb[0].mxu0 %v97
  %v195 = vpop.f32.mrb[0].mxu0
  %v196 = vadd.f32 0.0, %v195
  %v197 = vpop.f32.mrb[0].mxu0
  %v198 = vpop.f32.mrb[0].mxu0
  %v199 = vadd.f32 0.0, %v198
  %v200 = vpop.f32.mrb[0].mxu0
  %201 = vmatprep.mubr.bf16.mxu0 0
  %202 = vmatmul.mubr.bf16.gmra.mrb[0].mxu0 %v98
  %v203 = vpop.f32.mrb[0].mxu0
  %v204 = vadd.f32 0.0, %v203
  %v205 = vpop.f32.mrb[0].mxu0
  %v206 = vpop.f32.mrb[0].mxu0
  %v207 = vadd.f32 0.0, %v206
  %v208 = vpop.f32.mrb[0].mxu0
  %209 = vmatprep.mubr.bf16.mxu0 0
  %210 = vmatmul.mubr.bf16.gmra.mrb[0].mxu0 %v99
  %v211 = vpop.f32.mrb[0].mxu0
  %v212 = vadd.f32 0.0, %v211
  %v213 = vpop.f32.mrb[0].mxu0
  %v214 = vpop.f32.mrb[0].mxu0
  %v215 = vadd.f32 0.0, %v214
  %v216 = vpop.f32.mrb[0].mxu0
  %217 = vmatprep.mubr.bf16.mxu0 0
  %218 = vmatmul.mubr.bf16.gmra.mrb[0].mxu0 %v100
  %v219 = vpop.f32.mrb[0].mxu0
  %v220 = vadd.f32 0.0, %v219
  %v221 = vpop.f32.mrb[0].mxu0
  %v222 = vpop.f32.mrb[0].mxu0
  %v223 = vadd.f32 0.0, %v222
  %v224 = vpop.f32.mrb[0].mxu0
  %225 = vmatprep.mubr.bf16.mxu0 0
  %226 = vmatmul.mubr.bf16.gmra.mrb[0].mxu0 %v101
  %v227 = vpop.f32.mrb[0].mxu0
  %v228 = vadd.f32 0.0, %v227
  %v229 = vpop.f32.mrb[0].mxu0
  %v230 = vpop.f32.mrb[0].mxu0
  %v231 = vadd.f32 0.0, %v230
  %v232 = vpop.f32.mrb[0].mxu0
  %233 = vmatprep.mubr.bf16.mxu0 0
  %234 = vmatmul.mubr.bf16.gmra.mrb[0].mxu0 %v102
  %v235 = vpop.f32.mrb[0].mxu0
  %v236 = vadd.f32 0.0, %v235
  %v237 = vpop.f32.mrb[0].mxu0
  %v238 = vpop.f32.mrb[0].mxu0
  %v239 = vadd.f32 0.0, %v238
  %v240 = vpop.f32.mrb[0].mxu0
  %241 = vmatprep.mubr.bf16.mxu0 0
  %242 = vmatmul.mubr.bf16.gmra.mrb[0].mxu0 %v103
  %v243 = vpop.f32.mrb[0].mxu0
  %v244 = vadd.f32 0.0, %v243
  %v245 = vpop.f32.mrb[0].mxu0
  %v246 = vpop.f32.mrb[0].mxu0
  %v247 = vadd.f32 0.0, %v246
  %v248 = vpop.f32.mrb[0].mxu0
  %249 = vmatprep.mubr.bf16.mxu0 0
  %250 = vmatmul.mubr.bf16.gmra.mrb[0].mxu0 %v104
  %v251 = vpop.f32.mrb[0].mxu0
  %v252 = vadd.f32 0.0, %v251
  %v253 = vpop.f32.mrb[0].mxu0
  %v254 = vpop.f32.mrb[0].mxu0
  %v255 = vadd.f32 0.0, %v254
  %v256 = vpop.f32.mrb[0].mxu0
  %257 = vdwg.mxu0
  %v258 = vpack.c.bf16 %v199, %v196
  %v259 = vpack.c.bf16 %v207, %v204
  %v260 = vpack.c.bf16 %v215, %v212
  %v261 = vpack.c.bf16 %v223, %v220
  %v262 = vpack.c.bf16 %v231, %v228
  %v263 = vpack.c.bf16 %v239, %v236
  %v264 = vpack.c.bf16 %v247, %v244
  %v265 = vpack.c.bf16 %v255, %v252
  %v266 = vld [vmem:[%s2] sm:$0xf]
  %v267 = vld [vmem:[%s2 + $0x4] sm:$0xf]
  %v268 = vld [vmem:[%s2 + $0x8] sm:$0xf]
  %v269 = vld [vmem:[%s2 + $0xc] sm:$0xf]
  %v270 = vld [vmem:[%s2 + $0x10] sm:$0xf]
  %v271 = vld [vmem:[%s2 + $0x14] sm:$0xf]
  %v272 = vld [vmem:[%s2 + $0x18] sm:$0xf]
  %v273 = vld [vmem:[%s2 + $0x1c] sm:$0xf]
  %v274 = vld [vmem:[%s2 + $0x20] sm:$0xf]
  %v275 = vld [vmem:[%s2 + $0x24] sm:$0xf]
  %v276 = vld [vmem:[%s2 + $0x28] sm:$0xf]
  %v277 = vld [vmem:[%s2 + $0x2c] sm:$0xf]
  %v278 = vld [vmem:[%s2 + $0x30] sm:$0xf]
  %v279 = vld [vmem:[%s2 + $0x34] sm:$0xf]
  %v280 = vld [vmem:[%s2 + $0x38] sm:$0xf]
  %v281 = vld [vmem:[%s2 + $0x3c] sm:$0xf]
  %v282 = vld [vmem:[%s2 + $0x40] sm:$0xf]
  %v283 = vld [vmem:[%s2 + $0x44] sm:$0xf]
  %v284 = vld [vmem:[%s2 + $0x48] sm:$0xf]
  %v285 = vld [vmem:[%s2 + $0x4c] sm:$0xf]
  %v286 = vld [vmem:[%s2 + $0x50] sm:$0xf]
  %v287 = vld [vmem:[%s2 + $0x54] sm:$0xf]
  %v288 = vld [vmem:[%s2 + $0x58] sm:$0xf]
  %v289 = vld [vmem:[%s2 + $0x5c] sm:$0xf]
  %v290 = vld [vmem:[%s2 + $0x60] sm:$0xf]
  %v291 = vld [vmem:[%s2 + $0x64] sm:$0xf]
  %v292 = vld [vmem:[%s2 + $0x68] sm:$0xf]
  %v293 = vld [vmem:[%s2 + $0x6c] sm:$0xf]
  %v294 = vld [vmem:[%s2 + $0x70] sm:$0xf]
  %v295 = vld [vmem:[%s2 + $0x74] sm:$0xf]
  %v296 = vld [vmem:[%s2 + $0x78] sm:$0xf]
  %v297 = vld [vmem:[%s2 + $0x7c] sm:$0xf]
  %v298 = vld [vmem:[%s3] sm:$0x1]
  %v300 = vlaneseq
  %v301 = vshrl.u32 %v300, 7
  %v302 = vsub.s32 0, %v301
  %v303 = vrot.slane %v298, %v302
  %v337 = vunpack.c.l.b16 %v266
  %v338 = vunpack.c.l.b16 %v267
  %v339 = vunpack.c.l.b16 %v268
  %v340 = vunpack.c.l.b16 %v269
  %v341 = vunpack.c.l.b16 %v270
  %v342 = vunpack.c.l.b16 %v271
  %v343 = vunpack.c.l.b16 %v272
  %v344 = vunpack.c.l.b16 %v273
  %v345 = vunpack.c.l.b16 %v274
  %v346 = vunpack.c.l.b16 %v275
  %v347 = vunpack.c.l.b16 %v276
  %v348 = vunpack.c.l.b16 %v277
  %v349 = vunpack.c.l.b16 %v278
  %v350 = vunpack.c.l.b16 %v279
  %v351 = vunpack.c.l.b16 %v280
  %v352 = vunpack.c.l.b16 %v281
  %v353 = vunpack.c.l.b16 %v282
  %v354 = vunpack.c.l.b16 %v283
  %v355 = vunpack.c.l.b16 %v284
  %v356 = vunpack.c.l.b16 %v285
  %v357 = vunpack.c.l.b16 %v286
  %v358 = vunpack.c.l.b16 %v287
  %v359 = vunpack.c.l.b16 %v288
  %v360 = vunpack.c.l.b16 %v289
  %v361 = vunpack.c.l.b16 %v290
  %v362 = vunpack.c.l.b16 %v291
  %v363 = vunpack.c.l.b16 %v292
  %v364 = vunpack.c.l.b16 %v293
  %v365 = vunpack.c.l.b16 %v294
  %v366 = vunpack.c.l.b16 %v295
  %v367 = vunpack.c.l.b16 %v296
  %v368 = vunpack.c.l.b16 %v297
  %v369 = vpack.c.b16 %v338, %v337
  %v370 = vpack.c.b16 %v340, %v339
  %v371 = vpack.c.b16 %v342, %v341
  %v372 = vpack.c.b16 %v344, %v343
  %v373 = vpack.c.b16 %v346, %v345
  %v374 = vpack.c.b16 %v348, %v347
  %v375 = vpack.c.b16 %v350, %v349
  %v376 = vpack.c.b16 %v352, %v351
  %v377 = vpack.c.b16 %v354, %v353
  %v378 = vpack.c.b16 %v356, %v355
  %v379 = vpack.c.b16 %v358, %v357
  %v380 = vpack.c.b16 %v360, %v359
  %v381 = vpack.c.b16 %v362, %v361
  %v382 = vpack.c.b16 %v364, %v363
  %v383 = vpack.c.b16 %v366, %v365
  %v384 = vpack.c.b16 %v368, %v367
  %401 = vmatprep.subr.bf16.mxu0 0
  %402 = vmatpush1.bf16.msra.mxu0 %v369
  %403 = vmatprep.subr.bf16.mxu0 0
  %404 = vmatpush1.bf16.msra.mxu0 %v370
  %405 = vmatprep.subr.bf16.mxu0 0
  %406 = vmatpush1.bf16.msra.mxu0 %v371
  %407 = vmatprep.subr.bf16.mxu0 0
  %408 = vmatpush1.bf16.msra.mxu0 %v372
  %409 = vmatprep.subr.bf16.mxu0 0
  %410 = vmatpush1.bf16.msra.mxu0 %v373
  %411 = vmatprep.subr.bf16.mxu0 0
  %412 = vmatpush1.bf16.msra.mxu0 %v374
  %413 = vmatprep.subr.bf16.mxu0 0
  %414 = vmatpush1.bf16.msra.mxu0 %v375
  %415 = vmatprep.subr.bf16.mxu0 0
  %416 = vmatpush1.bf16.msra.mxu0 %v376
  %417 = vmatprep.subr.bf16.mxu0 0
  %418 = vmatpush1.bf16.msra.mxu0 %v377
  %419 = vmatprep.subr.bf16.mxu0 0
  %420 = vmatpush1.bf16.msra.mxu0 %v378
  %421 = vmatprep.subr.bf16.mxu0 0
  %422 = vmatpush1.bf16.msra.mxu0 %v379
  %423 = vmatprep.subr.bf16.mxu0 0
  %424 = vmatpush1.bf16.msra.mxu0 %v380
  %425 = vmatprep.subr.bf16.mxu0 0
  %426 = vmatpush1.bf16.msra.mxu0 %v381
  %427 = vmatprep.subr.bf16.mxu0 0
  %428 = vmatpush1.bf16.msra.mxu0 %v382
  %429 = vmatprep.subr.bf16.mxu0 0
  %430 = vmatpush1.bf16.msra.mxu0 %v383
  %431 = vmatprep.subr.bf16.mxu0 0
  %432 = vmatpush1.bf16.msra.mxu0 %v384
  %433 = vmatprep.mubr.bf16.mxu0 %v145
  %434 = vmatmul.mubr.bf16.gmra.mrb[0].mxu0 %v258
  %v435 = vpop.f32.mrb[0].mxu0
  %v436 = vadd.f32 %v303, %v435
  %v437 = vpop.f32.mrb[0].mxu0
  %v438 = vpop.f32.mrb[0].mxu0
  %v439 = vadd.f32 %v303, %v438
  %v440 = vpop.f32.mrb[0].mxu0
  %441 = vmatprep.mubr.bf16.mxu0 %v146
  %442 = vmatmul.mubr.bf16.gmra.mrb[0].mxu0 %v259
  %v443 = vpop.f32.mrb[0].mxu0
  %v444 = vadd.f32 %v303, %v443
  %v445 = vpop.f32.mrb[0].mxu0
  %v446 = vpop.f32.mrb[0].mxu0
  %v447 = vadd.f32 %v303, %v446
  %v448 = vpop.f32.mrb[0].mxu0
  %449 = vmatprep.mubr.bf16.mxu0 %v147
  %450 = vmatmul.mubr.bf16.gmra.mrb[0].mxu0 %v260
  %v451 = vpop.f32.mrb[0].mxu0
  %v452 = vadd.f32 %v303, %v451
  %v453 = vpop.f32.mrb[0].mxu0
  %v454 = vpop.f32.mrb[0].mxu0
  %v455 = vadd.f32 %v303, %v454
  %v456 = vpop.f32.mrb[0].mxu0
  %457 = vmatprep.mubr.bf16.mxu0 %v148
  %458 = vmatmul.mubr.bf16.gmra.mrb[0].mxu0 %v261
  %v459 = vpop.f32.mrb[0].mxu0
  %v460 = vadd.f32 %v303, %v459
  %v461 = vpop.f32.mrb[0].mxu0
  %v462 = vpop.f32.mrb[0].mxu0
  %v463 = vadd.f32 %v303, %v462
  %v464 = vpop.f32.mrb[0].mxu0
  %465 = vmatprep.mubr.bf16.mxu0 %v149
  %466 = vmatmul.mubr.bf16.gmra.mrb[0].mxu0 %v262
  %v467 = vpop.f32.mrb[0].mxu0
  %v468 = vadd.f32 %v303, %v467
  %v469 = vpop.f32.mrb[0].mxu0
  %v470 = vpop.f32.mrb[0].mxu0
  %v471 = vadd.f32 %v303, %v470
  %v472 = vpop.f32.mrb[0].mxu0
  %473 = vmatprep.mubr.bf16.mxu0 %v150
  %474 = vmatmul.mubr.bf16.gmra.mrb[0].mxu0 %v263
  %v475 = vpop.f32.mrb[0].mxu0
  %v476 = vadd.f32 %v303, %v475
  %v477 = vpop.f32.mrb[0].mxu0
  %v478 = vpop.f32.mrb[0].mxu0
  %v479 = vadd.f32 %v303, %v478
  %v480 = vpop.f32.mrb[0].mxu0
  %481 = vmatprep.mubr.bf16.mxu0 %v151
  %482 = vmatmul.mubr.bf16.gmra.mrb[0].mxu0 %v264
  %v483 = vpop.f32.mrb[0].mxu0
  %v484 = vadd.f32 %v303, %v483
  %v485 = vpop.f32.mrb[0].mxu0
  %v486 = vpop.f32.mrb[0].mxu0
  %v487 = vadd.f32 %v303, %v486
  %v488 = vpop.f32.mrb[0].mxu0
  %489 = vmatprep.mubr.bf16.mxu0 %v152
  %490 = vmatmul.mubr.bf16.gmra.mrb[0].mxu0 %v265
  %v491 = vpop.f32.mrb[0].mxu0
  %v492 = vadd.f32 %v303, %v491
  %v493 = vpop.f32.mrb[0].mxu0
  %v494 = vpop.f32.mrb[0].mxu0
  %v495 = vadd.f32 %v303, %v494
  %v496 = vpop.f32.mrb[0].mxu0
  %497 = vdwg.mxu0
  %v498 = vmax.f32 %v436, 0.0
  %v499 = vmax.f32 %v439, 0.0
  %v500 = vmax.f32 %v444, 0.0
  %v501 = vmax.f32 %v447, 0.0
  %v502 = vmax.f32 %v452, 0.0
  %v503 = vmax.f32 %v455, 0.0
  %v504 = vmax.f32 %v460, 0.0
  %v505 = vmax.f32 %v463, 0.0
  %v506 = vmax.f32 %v468, 0.0
  %v507 = vmax.f32 %v471, 0.0
  %v508 = vmax.f32 %v476, 0.0
  %v509 = vmax.f32 %v479, 0.0
  %v510 = vmax.f32 %v484, 0.0
  %v511 = vmax.f32 %v487, 0.0
  %v512 = vmax.f32 %v492, 0.0
  %v513 = vmax.f32 %v495, 0.0
  %v514 = vpack.c.bf16 %v499, %v498
  %v515 = vpack.c.bf16 %v501, %v500
  %v516 = vpack.c.bf16 %v503, %v502
  %v517 = vpack.c.bf16 %v505, %v504
  %v518 = vpack.c.bf16 %v507, %v506
  %v519 = vpack.c.bf16 %v509, %v508
  %v520 = vpack.c.bf16 %v511, %v510
  %v521 = vpack.c.bf16 %v513, %v512
  %522 = vmatprep.subr.bf16.mxu0 0
  %523 = vmatpush1.bf16.msra.mxu0 %v514
  %524 = vmatprep.subr.bf16.mxu0 0
  %525 = vmatpush1.bf16.msra.mxu0 %v515
  %526 = vmatprep.subr.bf16.mxu0 0
  %527 = vmatpush1.bf16.msra.mxu0 %v516
  %528 = vmatprep.subr.bf16.mxu0 0
  %529 = vmatpush1.bf16.msra.mxu0 %v517
  %530 = vmatprep.subr.bf16.mxu0 0
  %531 = vmatpush1.bf16.msra.mxu0 %v518
  %532 = vmatprep.subr.bf16.mxu0 0
  %533 = vmatpush1.bf16.msra.mxu0 %v519
  %534 = vmatprep.subr.bf16.mxu0 0
  %535 = vmatpush1.bf16.msra.mxu0 %v520
  %536 = vmatprep.subr.bf16.mxu0 0
  %537 = vmatpush1.bf16.msra.mxu0 %v521
  %538 = vmatprep.subr.bf16.mxu0 0
  %539 = vmatpush1.bf16.msra.mxu0 0
  %540 = vmatprep.subr.bf16.mxu0 0
  %541 = vmatpush1.bf16.msra.mxu0 0
  %542 = vmatprep.subr.bf16.mxu0 0
  %543 = vmatpush1.bf16.msra.mxu0 0
  %544 = vmatprep.subr.bf16.mxu0 0
  %545 = vmatpush1.bf16.msra.mxu0 0
  %546 = vmatprep.subr.bf16.mxu0 0
  %547 = vmatpush1.bf16.msra.mxu0 0
  %548 = vmatprep.subr.bf16.mxu0 0
  %549 = vmatpush1.bf16.msra.mxu0 0
  %550 = vmatprep.subr.bf16.mxu0 0
  %551 = vmatpush1.bf16.msra.mxu0 0
  %552 = vmatprep.subr.bf16.mxu0 0
  %553 = vmatpush1.bf16.msra.mxu0 0
  %554 = vmatprep.mubr.bf16.mxu0 0
  %555 = vmatmul.mubr.bf16.gmra.mrb[0].mxu0 %v97
  %v556 = vpop.f32.mrb[0].mxu0
  %v557 = vadd.f32 0.0, %v556
  %v558 = vpop.f32.mrb[0].mxu0
  %v559 = vpop.f32.mrb[0].mxu0
  %v560 = vadd.f32 0.0, %v559
  %v561 = vpop.f32.mrb[0].mxu0
  %562 = vmatprep.mubr.bf16.mxu0 0
  %563 = vmatmul.mubr.bf16.gmra.mrb[0].mxu0 %v98
  %v564 = vpop.f32.mrb[0].mxu0
  %v565 = vadd.f32 0.0, %v564
  %v566 = vpop.f32.mrb[0].mxu0
  %v567 = vpop.f32.mrb[0].mxu0
  %v568 = vadd.f32 0.0, %v567
  %v569 = vpop.f32.mrb[0].mxu0
  %570 = vmatprep.mubr.bf16.mxu0 0
  %571 = vmatmul.mubr.bf16.gmra.mrb[0].mxu0 %v99
  %v572 = vpop.f32.mrb[0].mxu0
  %v573 = vadd.f32 0.0, %v572
  %v574 = vpop.f32.mrb[0].mxu0
  %v575 = vpop.f32.mrb[0].mxu0
  %v576 = vadd.f32 0.0, %v575
  %v577 = vpop.f32.mrb[0].mxu0
  %578 = vmatprep.mubr.bf16.mxu0 0
  %579 = vmatmul.mubr.bf16.gmra.mrb[0].mxu0 %v100
  %v580 = vpop.f32.mrb[0].mxu0
  %v581 = vadd.f32 0.0, %v580
  %v582 = vpop.f32.mrb[0].mxu0
  %v583 = vpop.f32.mrb[0].mxu0
  %v584 = vadd.f32 0.0, %v583
  %v585 = vpop.f32.mrb[0].mxu0
  %586 = vmatprep.mubr.bf16.mxu0 0
  %587 = vmatmul.mubr.bf16.gmra.mrb[0].mxu0 %v101
  %v588 = vpop.f32.mrb[0].mxu0
  %v589 = vadd.f32 0.0, %v588
  %v590 = vpop.f32.mrb[0].mxu0
  %v591 = vpop.f32.mrb[0].mxu0
  %v592 = vadd.f32 0.0, %v591
  %v593 = vpop.f32.mrb[0].mxu0
  %594 = vmatprep.mubr.bf16.mxu0 0
  %595 = vmatmul.mubr.bf16.gmra.mrb[0].mxu0 %v102
  %v596 = vpop.f32.mrb[0].mxu0
  %v597 = vadd.f32 0.0, %v596
  %v598 = vpop.f32.mrb[0].mxu0
  %v599 = vpop.f32.mrb[0].mxu0
  %v600 = vadd.f32 0.0, %v599
  %v601 = vpop.f32.mrb[0].mxu0
  %602 = vmatprep.mubr.bf16.mxu0 0
  %603 = vmatmul.mubr.bf16.gmra.mrb[0].mxu0 %v103
  %v604 = vpop.f32.mrb[0].mxu0
  %v605 = vadd.f32 0.0, %v604
  %v606 = vpop.f32.mrb[0].mxu0
  %v607 = vpop.f32.mrb[0].mxu0
  %v608 = vadd.f32 0.0, %v607
  %v609 = vpop.f32.mrb[0].mxu0
  %610 = vmatprep.mubr.bf16.mxu0 0
  %611 = vmatmul.mubr.bf16.gmra.mrb[0].mxu0 %v104
  %v612 = vpop.f32.mrb[0].mxu0
  %v613 = vadd.f32 0.0, %v612
  %v614 = vpop.f32.mrb[0].mxu0
  %v615 = vpop.f32.mrb[0].mxu0
  %v616 = vadd.f32 0.0, %v615
  %v617 = vpop.f32.mrb[0].mxu0
  %618 = vdwg.mxu0
  %v619 = vpack.c.bf16 %v560, %v557
  %v620 = vpack.c.bf16 %v568, %v565
  %v621 = vpack.c.bf16 %v576, %v573
  %v622 = vpack.c.bf16 %v584, %v581
  %v623 = vpack.c.bf16 %v592, %v589
  %v624 = vpack.c.bf16 %v600, %v597
  %v625 = vpack.c.bf16 %v608, %v605
  %v626 = vpack.c.bf16 %v616, %v613
  %v627 = vld [vmem:[%s4] sm:$0xf]
  %v628 = vld [vmem:[%s4 + $0x4] sm:$0xf]
  %v629 = vld [vmem:[%s4 + $0x8] sm:$0xf]
  %v630 = vld [vmem:[%s4 + $0xc] sm:$0xf]
  %v631 = vld [vmem:[%s4 + $0x10] sm:$0xf]
  %v632 = vld [vmem:[%s4 + $0x14] sm:$0xf]
  %v633 = vld [vmem:[%s4 + $0x18] sm:$0xf]
  %v634 = vld [vmem:[%s4 + $0x1c] sm:$0xf]
  %v635 = vld [vmem:[%s4 + $0x20] sm:$0xf]
  %v636 = vld [vmem:[%s4 + $0x24] sm:$0xf]
  %v637 = vld [vmem:[%s4 + $0x28] sm:$0xf]
  %v638 = vld [vmem:[%s4 + $0x2c] sm:$0xf]
  %v639 = vld [vmem:[%s4 + $0x30] sm:$0xf]
  %v640 = vld [vmem:[%s4 + $0x34] sm:$0xf]
  %v641 = vld [vmem:[%s4 + $0x38] sm:$0xf]
  %v642 = vld [vmem:[%s4 + $0x3c] sm:$0xf]
  %v643 = vld [vmem:[%s4 + $0x40] sm:$0xf]
  %v644 = vld [vmem:[%s4 + $0x44] sm:$0xf]
  %v645 = vld [vmem:[%s4 + $0x48] sm:$0xf]
  %v646 = vld [vmem:[%s4 + $0x4c] sm:$0xf]
  %v647 = vld [vmem:[%s4 + $0x50] sm:$0xf]
  %v648 = vld [vmem:[%s4 + $0x54] sm:$0xf]
  %v649 = vld [vmem:[%s4 + $0x58] sm:$0xf]
  %v650 = vld [vmem:[%s4 + $0x5c] sm:$0xf]
  %v651 = vld [vmem:[%s4 + $0x60] sm:$0xf]
  %v652 = vld [vmem:[%s4 + $0x64] sm:$0xf]
  %v653 = vld [vmem:[%s4 + $0x68] sm:$0xf]
  %v654 = vld [vmem:[%s4 + $0x6c] sm:$0xf]
  %v655 = vld [vmem:[%s4 + $0x70] sm:$0xf]
  %v656 = vld [vmem:[%s4 + $0x74] sm:$0xf]
  %v657 = vld [vmem:[%s4 + $0x78] sm:$0xf]
  %v658 = vld [vmem:[%s4 + $0x7c] sm:$0xf]
  %v659 = vld [vmem:[%s5] sm:$0x1]
  %v661 = vlaneseq
  %v662 = vshrl.u32 %v661, 7
  %v663 = vsub.s32 0, %v662
  %v664 = vrot.slane %v659, %v663
  %v698 = vunpack.c.l.b16 %v627
  %v699 = vunpack.c.l.b16 %v628
  %v700 = vunpack.c.l.b16 %v629
  %v701 = vunpack.c.l.b16 %v630
  %v702 = vunpack.c.l.b16 %v631
  %v703 = vunpack.c.l.b16 %v632
  %v704 = vunpack.c.l.b16 %v633
  %v705 = vunpack.c.l.b16 %v634
  %v706 = vunpack.c.l.b16 %v635
  %v707 = vunpack.c.l.b16 %v636
  %v708 = vunpack.c.l.b16 %v637
  %v709 = vunpack.c.l.b16 %v638
  %v710 = vunpack.c.l.b16 %v639
  %v711 = vunpack.c.l.b16 %v640
  %v712 = vunpack.c.l.b16 %v641
  %v713 = vunpack.c.l.b16 %v642
  %v714 = vunpack.c.l.b16 %v643
  %v715 = vunpack.c.l.b16 %v644
  %v716 = vunpack.c.l.b16 %v645
  %v717 = vunpack.c.l.b16 %v646
  %v718 = vunpack.c.l.b16 %v647
  %v719 = vunpack.c.l.b16 %v648
  %v720 = vunpack.c.l.b16 %v649
  %v721 = vunpack.c.l.b16 %v650
  %v722 = vunpack.c.l.b16 %v651
  %v723 = vunpack.c.l.b16 %v652
  %v724 = vunpack.c.l.b16 %v653
  %v725 = vunpack.c.l.b16 %v654
  %v726 = vunpack.c.l.b16 %v655
  %v727 = vunpack.c.l.b16 %v656
  %v728 = vunpack.c.l.b16 %v657
  %v729 = vunpack.c.l.b16 %v658
  %v730 = vpack.c.b16 %v699, %v698
  %v731 = vpack.c.b16 %v701, %v700
  %v732 = vpack.c.b16 %v703, %v702
  %v733 = vpack.c.b16 %v705, %v704
  %v734 = vpack.c.b16 %v707, %v706
  %v735 = vpack.c.b16 %v709, %v708
  %v736 = vpack.c.b16 %v711, %v710
  %v737 = vpack.c.b16 %v713, %v712
  %v738 = vpack.c.b16 %v715, %v714
  %v739 = vpack.c.b16 %v717, %v716
  %v740 = vpack.c.b16 %v719, %v718
  %v741 = vpack.c.b16 %v721, %v720
  %v742 = vpack.c.b16 %v723, %v722
  %v743 = vpack.c.b16 %v725, %v724
  %v744 = vpack.c.b16 %v727, %v726
  %v745 = vpack.c.b16 %v729, %v728
  %762 = vmatprep.subr.bf16.mxu0 0
  %763 = vmatpush1.bf16.msra.mxu0 %v730
  %764 = vmatprep.subr.bf16.mxu0 0
  %765 = vmatpush1.bf16.msra.mxu0 %v731
  %766 = vmatprep.subr.bf16.mxu0 0
  %767 = vmatpush1.bf16.msra.mxu0 %v732
  %768 = vmatprep.subr.bf16.mxu0 0
  %769 = vmatpush1.bf16.msra.mxu0 %v733
  %770 = vmatprep.subr.bf16.mxu0 0
  %771 = vmatpush1.bf16.msra.mxu0 %v734
  %772 = vmatprep.subr.bf16.mxu0 0
  %773 = vmatpush1.bf16.msra.mxu0 %v735
  %774 = vmatprep.subr.bf16.mxu0 0
  %775 = vmatpush1.bf16.msra.mxu0 %v736
  %776 = vmatprep.subr.bf16.mxu0 0
  %777 = vmatpush1.bf16.msra.mxu0 %v737
  %778 = vmatprep.subr.bf16.mxu0 0
  %779 = vmatpush1.bf16.msra.mxu0 %v738
  %780 = vmatprep.subr.bf16.mxu0 0
  %781 = vmatpush1.bf16.msra.mxu0 %v739
  %782 = vmatprep.subr.bf16.mxu0 0
  %783 = vmatpush1.bf16.msra.mxu0 %v740
  %784 = vmatprep.subr.bf16.mxu0 0
  %785 = vmatpush1.bf16.msra.mxu0 %v741
  %786 = vmatprep.subr.bf16.mxu0 0
  %787 = vmatpush1.bf16.msra.mxu0 %v742
  %788 = vmatprep.subr.bf16.mxu0 0
  %789 = vmatpush1.bf16.msra.mxu0 %v743
  %790 = vmatprep.subr.bf16.mxu0 0
  %791 = vmatpush1.bf16.msra.mxu0 %v744
  %792 = vmatprep.subr.bf16.mxu0 0
  %793 = vmatpush1.bf16.msra.mxu0 %v745
  %794 = vmatprep.mubr.bf16.mxu0 %v514
  %795 = vmatmul.mubr.bf16.gmra.mrb[0].mxu0 %v619
  %v796 = vpop.f32.mrb[0].mxu0
  %v797 = vadd.f32 %v664, %v796
  %v798 = vpop.f32.mrb[0].mxu0
  %v799 = vpop.f32.mrb[0].mxu0
  %v800 = vadd.f32 %v664, %v799
  %v801 = vpop.f32.mrb[0].mxu0
  %802 = vmatprep.mubr.bf16.mxu0 %v515
  %803 = vmatmul.mubr.bf16.gmra.mrb[0].mxu0 %v620
  %v804 = vpop.f32.mrb[0].mxu0
  %v805 = vadd.f32 %v664, %v804
  %v806 = vpop.f32.mrb[0].mxu0
  %v807 = vpop.f32.mrb[0].mxu0
  %v808 = vadd.f32 %v664, %v807
  %v809 = vpop.f32.mrb[0].mxu0
  %810 = vmatprep.mubr.bf16.mxu0 %v516
  %811 = vmatmul.mubr.bf16.gmra.mrb[0].mxu0 %v621
  %v812 = vpop.f32.mrb[0].mxu0
  %v813 = vadd.f32 %v664, %v812
  %v814 = vpop.f32.mrb[0].mxu0
  %v815 = vpop.f32.mrb[0].mxu0
  %v816 = vadd.f32 %v664, %v815
  %v817 = vpop.f32.mrb[0].mxu0
  %818 = vmatprep.mubr.bf16.mxu0 %v517
  %819 = vmatmul.mubr.bf16.gmra.mrb[0].mxu0 %v622
  %v820 = vpop.f32.mrb[0].mxu0
  %v821 = vadd.f32 %v664, %v820
  %v822 = vpop.f32.mrb[0].mxu0
  %v823 = vpop.f32.mrb[0].mxu0
  %v824 = vadd.f32 %v664, %v823
  %v825 = vpop.f32.mrb[0].mxu0
  %826 = vmatprep.mubr.bf16.mxu0 %v518
  %827 = vmatmul.mubr.bf16.gmra.mrb[0].mxu0 %v623
  %v828 = vpop.f32.mrb[0].mxu0
  %v829 = vadd.f32 %v664, %v828
  %v830 = vpop.f32.mrb[0].mxu0
  %v831 = vpop.f32.mrb[0].mxu0
  %v832 = vadd.f32 %v664, %v831
  %v833 = vpop.f32.mrb[0].mxu0
  %834 = vmatprep.mubr.bf16.mxu0 %v519
  %835 = vmatmul.mubr.bf16.gmra.mrb[0].mxu0 %v624
  %v836 = vpop.f32.mrb[0].mxu0
  %v837 = vadd.f32 %v664, %v836
  %v838 = vpop.f32.mrb[0].mxu0
  %v839 = vpop.f32.mrb[0].mxu0
  %v840 = vadd.f32 %v664, %v839
  %v841 = vpop.f32.mrb[0].mxu0
  %842 = vmatprep.mubr.bf16.mxu0 %v520
  %843 = vmatmul.mubr.bf16.gmra.mrb[0].mxu0 %v625
  %v844 = vpop.f32.mrb[0].mxu0
  %v845 = vadd.f32 %v664, %v844
  %v846 = vpop.f32.mrb[0].mxu0
  %v847 = vpop.f32.mrb[0].mxu0
  %v848 = vadd.f32 %v664, %v847
  %v849 = vpop.f32.mrb[0].mxu0
  %850 = vmatprep.mubr.bf16.mxu0 %v521
  %851 = vmatmul.mubr.bf16.gmra.mrb[0].mxu0 %v626
  %v852 = vpop.f32.mrb[0].mxu0
  %v853 = vadd.f32 %v664, %v852
  %v854 = vpop.f32.mrb[0].mxu0
  %v855 = vpop.f32.mrb[0].mxu0
  %v856 = vadd.f32 %v664, %v855
  %v857 = vpop.f32.mrb[0].mxu0
  %858 = vdwg.mxu0
  %v859 = vpack.c.bf16 %v800, %v797
  %v860 = vpack.c.bf16 %v808, %v805
  %v861 = vpack.c.bf16 %v816, %v813
  %v862 = vpack.c.bf16 %v824, %v821
  %v863 = vpack.c.bf16 %v832, %v829
  %v864 = vpack.c.bf16 %v840, %v837
  %v865 = vpack.c.bf16 %v848, %v845
  %v866 = vpack.c.bf16 %v856, %v853
  %v867 = vld [vmem:[%s6] sm:$0xf]
  %868 = vmatprep.subr.bf16.mxu0 0
  %869 = vmatpush1.bf16.msra.mxu0 %v859
  %870 = vmatprep.subr.bf16.mxu0 0
  %871 = vmatpush1.bf16.msra.mxu0 %v860
  %872 = vmatprep.subr.bf16.mxu0 0
  %873 = vmatpush1.bf16.msra.mxu0 %v861
  %874 = vmatprep.subr.bf16.mxu0 0
  %875 = vmatpush1.bf16.msra.mxu0 %v862
  %876 = vmatprep.subr.bf16.mxu0 0
  %877 = vmatpush1.bf16.msra.mxu0 %v863
  %878 = vmatprep.subr.bf16.mxu0 0
  %879 = vmatpush1.bf16.msra.mxu0 %v864
  %880 = vmatprep.subr.bf16.mxu0 0
  %881 = vmatpush1.bf16.msra.mxu0 %v865
  %882 = vmatprep.subr.bf16.mxu0 0
  %883 = vmatpush1.bf16.msra.mxu0 %v866
  %884 = vmatprep.subr.bf16.mxu0 0
  %885 = vmatpush1.bf16.msra.mxu0 0
  %886 = vmatprep.subr.bf16.mxu0 0
  %887 = vmatpush1.bf16.msra.mxu0 0
  %888 = vmatprep.subr.bf16.mxu0 0
  %889 = vmatpush1.bf16.msra.mxu0 0
  %890 = vmatprep.subr.bf16.mxu0 0
  %891 = vmatpush1.bf16.msra.mxu0 0
  %892 = vmatprep.subr.bf16.mxu0 0
  %893 = vmatpush1.bf16.msra.mxu0 0
  %894 = vmatprep.subr.bf16.mxu0 0
  %895 = vmatpush1.bf16.msra.mxu0 0
  %896 = vmatprep.subr.bf16.mxu0 0
  %897 = vmatpush1.bf16.msra.mxu0 0
  %898 = vmatprep.subr.bf16.mxu0 0
  %899 = vmatpush1.bf16.msra.mxu0 0
  %900 = vmatprep.mubr.bf16.mxu0 0
  %901 = vmatmul.mubr.bf16.gmra.mrb[0].mxu0 %v867
  %v902 = vpop.f32.mrb[0].mxu0
  %v903 = vadd.f32 0.0, %v902
  %v904 = vpop.f32.mrb[0].mxu0
  %v905 = vpop.f32.mrb[0].mxu0
  %v906 = vpop.f32.mrb[0].mxu0
  %907 = vdwg.mxu0
  %v908 = vpack.c.bf16 %v903, %v903
  %v909 = vld [vmem:[%s7] sm:$0xf]
  %v910 = vld [vmem:[%s7 + $0x4] sm:$0xf]
  %v911 = vld [vmem:[%s7 + $0x8] sm:$0xf]
  %v912 = vld [vmem:[%s7 + $0xc] sm:$0xf]
  %v913 = vld [vmem:[%s7 + $0x10] sm:$0xf]
  %v914 = vld [vmem:[%s7 + $0x14] sm:$0xf]
  %v915 = vld [vmem:[%s7 + $0x18] sm:$0xf]
  %v916 = vld [vmem:[%s7 + $0x1c] sm:$0xf]
  %v917 = vld [vmem:[%s7 + $0x20] sm:$0xf]
  %v918 = vld [vmem:[%s7 + $0x24] sm:$0xf]
  %v919 = vld [vmem:[%s7 + $0x28] sm:$0xf]
  %v920 = vld [vmem:[%s7 + $0x2c] sm:$0xf]
  %v921 = vld [vmem:[%s7 + $0x30] sm:$0xf]
  %v922 = vld [vmem:[%s7 + $0x34] sm:$0xf]
  %v923 = vld [vmem:[%s7 + $0x38] sm:$0xf]
  %v924 = vld [vmem:[%s7 + $0x3c] sm:$0xf]
  %v925 = vld [vmem:[%s8] sm:$0x1]
  %v927 = vlaneseq
  %v928 = vshrl.u32 %v927, 7
  %v929 = vsub.s32 0, %v928
  %v930 = vrot.slane %v925, %v929
  %v948 = vunpack.c.l.b16 %v909
  %v949 = vunpack.c.l.b16 %v910
  %v950 = vunpack.c.l.b16 %v911
  %v951 = vunpack.c.l.b16 %v912
  %v952 = vunpack.c.l.b16 %v913
  %v953 = vunpack.c.l.b16 %v914
  %v954 = vunpack.c.l.b16 %v915
  %v955 = vunpack.c.l.b16 %v916
  %v956 = vunpack.c.l.b16 %v917
  %v957 = vunpack.c.l.b16 %v918
  %v958 = vunpack.c.l.b16 %v919
  %v959 = vunpack.c.l.b16 %v920
  %v960 = vunpack.c.l.b16 %v921
  %v961 = vunpack.c.l.b16 %v922
  %v962 = vunpack.c.l.b16 %v923
  %v963 = vunpack.c.l.b16 %v924
  %v964 = vpack.c.b16 %v949, %v948
  %v965 = vpack.c.b16 %v951, %v950
  %v966 = vpack.c.b16 %v953, %v952
  %v967 = vpack.c.b16 %v955, %v954
  %v968 = vpack.c.b16 %v957, %v956
  %v969 = vpack.c.b16 %v959, %v958
  %v970 = vpack.c.b16 %v961, %v960
  %v971 = vpack.c.b16 %v963, %v962
  %980 = vmatprep.subr.bf16.mxu0 0
  %981 = vmatpush1.bf16.msra.mxu0 %v964
  %982 = vmatprep.subr.bf16.mxu0 0
  %983 = vmatpush1.bf16.msra.mxu0 %v965
  %984 = vmatprep.subr.bf16.mxu0 0
  %985 = vmatpush1.bf16.msra.mxu0 %v966
  %986 = vmatprep.subr.bf16.mxu0 0
  %987 = vmatpush1.bf16.msra.mxu0 %v967
  %988 = vmatprep.subr.bf16.mxu0 0
  %989 = vmatpush1.bf16.msra.mxu0 %v968
  %990 = vmatprep.subr.bf16.mxu0 0
  %991 = vmatpush1.bf16.msra.mxu0 %v969
  %992 = vmatprep.subr.bf16.mxu0 0
  %993 = vmatpush1.bf16.msra.mxu0 %v970
  %994 = vmatprep.subr.bf16.mxu0 0
  %995 = vmatpush1.bf16.msra.mxu0 %v971
  %996 = vmatprep.subr.bf16.mxu0 0
  %997 = vmatpush1.bf16.msra.mxu0 0
  %998 = vmatprep.subr.bf16.mxu0 0
  %999 = vmatpush1.bf16.msra.mxu0 0
  %1000 = vmatprep.subr.bf16.mxu0 0
  %1001 = vmatpush1.bf16.msra.mxu0 0
  %1002 = vmatprep.subr.bf16.mxu0 0
  %1003 = vmatpush1.bf16.msra.mxu0 0
  %1004 = vmatprep.subr.bf16.mxu0 0
  %1005 = vmatpush1.bf16.msra.mxu0 0
  %1006 = vmatprep.subr.bf16.mxu0 0
  %1007 = vmatpush1.bf16.msra.mxu0 0
  %1008 = vmatprep.subr.bf16.mxu0 0
  %1009 = vmatpush1.bf16.msra.mxu0 0
  %1010 = vmatprep.subr.bf16.mxu0 0
  %1011 = vmatpush1.bf16.msra.mxu0 0
  %1012 = vmatprep.mubr.bf16.mxu0 0
  %1013 = vmatmul.mubr.bf16.gmra.mrb[0].mxu0 %v908
  %v1014 = vpop.f32.mrb[0].mxu0
  %v1015 = vadd.f32 %v930, %v1014
  %v1016 = vpop.f32.mrb[0].mxu0
  %v1017 = vpop.f32.mrb[0].mxu0
  %v1018 = vpop.f32.mrb[0].mxu0
  %1019 = vdwg.mxu0
  %1020 = vst [vmem:[%s9] sm:$0xff] %v1015
  // Predicated region
  $region38: #{graphsage_forward.1} parent=0 // pred_check
    _
  $region39: #{graphsage_forward.1} parent=0 // pred_check_branch
    %1022 = sbr.rel (0) target = $region41
  $region40: #{graphsage_forward.1} parent=0 // pred_region
    _
  $region41: #{graphsage_forward.1} parent=0 // pred_fallthru
    _
  // Predicated region
  $region42: #{graphsage_forward.1} parent=0 // pred_check
    _
  $region43: #{graphsage_forward.1} parent=0 // pred_check_branch
    %1024 = sbr.rel (0) target = $region45
  $region44: #{graphsage_forward.1} parent=0 // pred_region
    _
  $region45: #{graphsage_forward.1} parent=0 // pred_fallthru
    _

</llo_original>
